<compile_context>
chip_gen: v5e
topology: v5e:2x2
jax: 0.10.0
libtpu: 0.0.40
codegen_flags: <defaults>
</compile_context>

<pallas_src>
import functools

import jax
import jax.numpy as jnp
from jax.experimental import pallas as pl
from jax.experimental.pallas import tpu as pltpu

LANE = 128


def _mlp_kernel(x_ref, w1_ref, b1_ref, w2_ref, b2_ref, o_ref):
    x = x_ref[...]                               # [tb, obs] f32
    obs = w1_ref.shape[0]

    # ---- Layer 1 on the VPU: tiny contraction (K = obs), pairwise FMA tree --
    terms = [x[:, k:k + 1] * w1_ref[k:k + 1, :] for k in range(obs)]
    while len(terms) > 1:
        nxt = [terms[i] + terms[i + 1] for i in range(0, len(terms) - 1, 2)]
        if len(terms) % 2:
            nxt.append(terms[-1])
        terms = nxt
    h = jnp.maximum(terms[0] + b1_ref[...], 0.0)  # [tb, hidden] f32

    # ---- Layer 2 on the MXU: bf16 inputs, f32 accumulation, lane-dense out --
    o = jnp.dot(h.astype(w2_ref.dtype), w2_ref[...],
                preferred_element_type=jnp.float32)
    o_ref[...] = (o + b2_ref[...]).astype(o_ref.dtype)


def prepare_params(w1, b1, w2, b2):
    """One-time parameter packing (do NOT call per forward).

    w1: [obs, hidden], b1: [hidden] or [1, hidden]   -> kept f32
    w2: [hidden, n_actions], b2: [n_actions]         -> padded to 128 lanes,
                                                        w2 cast to bf16
    Returns (w1, b1, w2p, b2p, n_actions).
    """
    hidden, n_actions = w2.shape
    n_pad = ((n_actions + LANE - 1) // LANE) * LANE
    w2p = jnp.zeros((hidden, n_pad), jnp.bfloat16).at[:, :n_actions].set(
        w2.astype(jnp.bfloat16))
    b2p = jnp.zeros((1, n_pad), jnp.float32).at[:, :n_actions].set(
        b2.reshape(1, -1).astype(jnp.float32))
    return (w1.astype(jnp.float32),
            b1.reshape(1, -1).astype(jnp.float32),
            w2p, b2p, n_actions)


@functools.partial(jax.jit, static_argnames=("n_actions", "block_b"))
def net_forward(x, w1, b1, w2p, b2p, *, n_actions, block_b=2048):
    """2-layer MLP forward (Linear -> ReLU -> Linear) as one Pallas kernel.

    x:   [B, obs]          f32
    w1:  [obs, hidden]     f32       (torch weight transposed)
    b1:  [1, hidden]       f32
    w2p: [hidden, n_pad]   bf16      (pre-padded/cast by prepare_params)
    b2p: [1, n_pad]        f32       (pre-padded)
    returns: [B, n_actions] f32
    """
    B, obs = x.shape
    hidden = w1.shape[1]
    n_pad = w2p.shape[1]

    # Batch tile: multiple of 8 sublanes, >= 2 grid steps once B >= 16 rows
    # (so both v7x TensorCores get work), capped at block_b.
    half = (B + 1) // 2
    tb = min(block_b, max(8, ((half + 7) // 8) * 8))
    grid_b = pl.cdiv(B, tb)
    # Partial last block: OOB reads produce garbage rows, OOB writes are
    # discarded.  Nothing in the kernel reduces across batch rows, so this is
    # safe and avoids an explicit pad/copy of x.

    flops = 2 * B * hidden * (obs + n_pad)
    bytes_accessed = (B * obs * 4 + B * n_pad * 4
                      + w1.size * 4 + b1.size * 4
                      + w2p.size * 2 + b2p.size * 4)

    out = pl.pallas_call(
        _mlp_kernel,
        out_shape=jax.ShapeDtypeStruct((B, n_pad), jnp.float32),
        grid_spec=pltpu.PrefetchScalarGridSpec(
            num_scalar_prefetch=0,
            grid=(grid_b,),
            in_specs=[
                pl.BlockSpec((tb, obs), lambda i: (i, 0)),        # x: tiled over batch
                pl.BlockSpec((obs, hidden), lambda i: (0, 0)),    # w1: resident
                pl.BlockSpec((1, hidden), lambda i: (0, 0)),      # b1: resident
                pl.BlockSpec((hidden, n_pad), lambda i: (0, 0)),  # w2 (bf16, padded)
                pl.BlockSpec((1, n_pad), lambda i: (0, 0)),       # b2 (padded)
            ],
            out_specs=pl.BlockSpec((tb, n_pad), lambda i: (i, 0)),
        ),
        compiler_params=pltpu.CompilerParams(
            dimension_semantics=("parallel",),      # megacore split on v7x
        ),
        cost_estimate=pl.CostEstimate(
            flops=flops, transcendentals=0, bytes_accessed=bytes_accessed),
    )(x, w1, b1, w2p, b2p)

    return out[:, :n_actions]


if __name__ == "__main__":
    # CartPole-style sizes: obs_size=4, hidden_size=128, n_actions=2
    obs_size, hidden_size, n_actions = 4, 128, 2

    key = jax.random.PRNGKey(0)
    kx, kw1, kb1, kw2, kb2 = jax.random.split(key, 5)

    # Deterministic synthetic weights (not a checkpoint load).
    w1 = jax.random.normal(kw1, (obs_size, hidden_size), dtype=jnp.float32) * 0.1
    b1 = jax.random.normal(kb1, (hidden_size,), dtype=jnp.float32) * 0.1
    w2 = jax.random.normal(kw2, (hidden_size, n_actions), dtype=jnp.float32) * 0.1
    b2 = jax.random.normal(kb2, (n_actions,), dtype=jnp.float32) * 0.1

    # One-time packing (hoisted out of the hot path).
    w1p, b1p, w2p, b2p, n_act = prepare_params(w1, b1, w2, b2)

    ok = True
    for batch in (16, 10):    # 10 exercises the partial (clipped) batch block
        x = jax.random.normal(kx, (batch, obs_size), dtype=jnp.float32)
        out = net_forward(x, w1p, b1p, w2p, b2p, n_actions=n_act)
        jax.block_until_ready(out)

        # Pure-JAX f32 reference (same math as torch's Sequential).  Layer 2 in
        # the kernel uses bf16 MXU inputs, hence the relaxed tolerance.
        ref = jnp.maximum(x @ w1 + b1.reshape(1, -1), 0.0) @ w2 + b2.reshape(1, -1)
        ok &= out.shape == (batch, n_actions)
        ok &= bool(jnp.allclose(out, ref, atol=1e-2, rtol=1e-2))

    assert ok
    print("KERNEL_OK")
</pallas_src>

<mosaic_0001>
module attributes {stable_mosaic.version = 11 : i64} {
  func.func @_mlp_kernel(%arg0: i32, %arg1: memref<8x4xf32, #tpu.memory_space<vmem>>, %arg2: memref<4x128xf32, #tpu.memory_space<vmem>>, %arg3: memref<1x128xf32, #tpu.memory_space<vmem>>, %arg4: memref<128x128xbf16, #tpu.memory_space<vmem>>, %arg5: memref<1x128xf32, #tpu.memory_space<vmem>>, %arg6: memref<8x128xf32, #tpu.memory_space<vmem>>) attributes {dimension_semantics = [#tpu.dimension_semantics<parallel>], iteration_bounds = array<i64: 2>, scalar_prefetch = 0 : i64, scratch_operands = 0 : i64, tpu.core_type = #tpu.core_type<tc>, window_params = [{transform_indices = @transform_0, window_bounds = array<i64: 8, 4>}, {pipeline_mode = #tpu.pipeline_mode<synchronous>, transform_indices = @transform_1, window_bounds = array<i64: 4, 128>}, {pipeline_mode = #tpu.pipeline_mode<synchronous>, transform_indices = @transform_2, window_bounds = array<i64: 1, 128>}, {pipeline_mode = #tpu.pipeline_mode<synchronous>, transform_indices = @transform_3, window_bounds = array<i64: 128, 128>}, {pipeline_mode = #tpu.pipeline_mode<synchronous>, transform_indices = @transform_4, window_bounds = array<i64: 1, 128>}, {transform_indices = @transform_5, window_bounds = array<i64: 8, 128>}]} {
    %c0 = arith.constant 0 : index
    %c0_0 = arith.constant 0 : index
    %0 = vector.load %arg1[%c0, %c0_0] : memref<8x4xf32, #tpu.memory_space<vmem>>, vector<8x4xf32>
    %1 = vector.extract_strided_slice %0 {offsets = [0, 0], sizes = [8, 1], strides = [1, 1]} : vector<8x4xf32> to vector<8x1xf32>
    %c0_1 = arith.constant 0 : index
    %c0_2 = arith.constant 0 : index
    %2 = vector.load %arg2[%c0_1, %c0_2] : memref<4x128xf32, #tpu.memory_space<vmem>>, vector<1x128xf32>
    %3 = vector.broadcast %1 : vector<8x1xf32> to vector<8x128xf32>
    %4 = vector.broadcast %2 : vector<1x128xf32> to vector<8x128xf32>
    %5 = arith.mulf %3, %4 : vector<8x128xf32>
    %6 = vector.extract_strided_slice %0 {offsets = [0, 1], sizes = [8, 1], strides = [1, 1]} : vector<8x4xf32> to vector<8x1xf32>
    %c1 = arith.constant 1 : index
    %c0_3 = arith.constant 0 : index
    %7 = vector.load %arg2[%c1, %c0_3] : memref<4x128xf32, #tpu.memory_space<vmem>>, vector<1x128xf32>
    %8 = vector.broadcast %6 : vector<8x1xf32> to vector<8x128xf32>
    %9 = vector.broadcast %7 : vector<1x128xf32> to vector<8x128xf32>
    %10 = arith.mulf %8, %9 : vector<8x128xf32>
    %11 = vector.extract_strided_slice %0 {offsets = [0, 2], sizes = [8, 1], strides = [1, 1]} : vector<8x4xf32> to vector<8x1xf32>
    %c2 = arith.constant 2 : index
    %c0_4 = arith.constant 0 : index
    %12 = vector.load %arg2[%c2, %c0_4] : memref<4x128xf32, #tpu.memory_space<vmem>>, vector<1x128xf32>
    %13 = vector.broadcast %11 : vector<8x1xf32> to vector<8x128xf32>
    %14 = vector.broadcast %12 : vector<1x128xf32> to vector<8x128xf32>
    %15 = arith.mulf %13, %14 : vector<8x128xf32>
    %16 = vector.extract_strided_slice %0 {offsets = [0, 3], sizes = [8, 1], strides = [1, 1]} : vector<8x4xf32> to vector<8x1xf32>
    %c3 = arith.constant 3 : index
    %c0_5 = arith.constant 0 : index
    %17 = vector.load %arg2[%c3, %c0_5] : memref<4x128xf32, #tpu.memory_space<vmem>>, vector<1x128xf32>
    %18 = vector.broadcast %16 : vector<8x1xf32> to vector<8x128xf32>
    %19 = vector.broadcast %17 : vector<1x128xf32> to vector<8x128xf32>
    %20 = arith.mulf %18, %19 : vector<8x128xf32>
    %21 = arith.addf %5, %10 : vector<8x128xf32>
    %22 = arith.addf %15, %20 : vector<8x128xf32>
    %23 = arith.addf %21, %22 : vector<8x128xf32>
    %c0_6 = arith.constant 0 : index
    %c0_7 = arith.constant 0 : index
    %24 = vector.load %arg3[%c0_6, %c0_7] : memref<1x128xf32, #tpu.memory_space<vmem>>, vector<1x128xf32>
    %25 = vector.broadcast %24 : vector<1x128xf32> to vector<8x128xf32>
    %26 = arith.addf %23, %25 : vector<8x128xf32>
    %cst = arith.constant 0.000000e+00 : f32
    %27 = vector.broadcast %cst : f32 to vector<8x128xf32>
    %28 = arith.maximumf %26, %27 : vector<8x128xf32>
    %29 = arith.truncf %28 : vector<8x128xf32> to vector<8x128xbf16>
    %c0_8 = arith.constant 0 : index
    %c0_9 = arith.constant 0 : index
    %30 = vector.load %arg4[%c0_8, %c0_9] : memref<128x128xbf16, #tpu.memory_space<vmem>>, vector<128x128xbf16>
    %cst_10 = arith.constant dense<0.000000e+00> : vector<8x128xf32>
    %31 = tpu.matmul %29, %30, %cst_10 {dimension_numbers = #tpu.dot_dimension_numbers<[1], [0], [0], [1], [0, 0, 1, 1], [], []>} : vector<8x128xbf16>, vector<128x128xbf16>, vector<8x128xf32> -> vector<8x128xf32>
    %c0_11 = arith.constant 0 : index
    %c0_12 = arith.constant 0 : index
    %32 = vector.load %arg5[%c0_11, %c0_12] : memref<1x128xf32, #tpu.memory_space<vmem>>, vector<1x128xf32>
    %33 = vector.broadcast %32 : vector<1x128xf32> to vector<8x128xf32>
    %34 = arith.addf %31, %33 : vector<8x128xf32>
    %c0_13 = arith.constant 0 : index
    %c0_14 = arith.constant 0 : index
    %35 = vector.load %arg6[%c0_13, %c0_14] : memref<8x128xf32, #tpu.memory_space<vmem>>, vector<8x128xf32>
    tpu.vector_store %arg6[%c0_13, %c0_14], %34 {strides = array<i32>} : memref<8x128xf32, #tpu.memory_space<vmem>>, vector<8x128xf32>,
    return
  }
  func.func @transform_0(%arg0: i32) -> (i32, i32) {
    %c0_i32 = arith.constant 0 : i32
    %c0_i32_0 = arith.constant 0 : i32
    return %arg0, %c0_i32 : i32, i32
  }
  func.func @transform_1(%arg0: i32) -> (i32, i32) {
    %c0_i32 = arith.constant 0 : i32
    %c0_i32_0 = arith.constant 0 : i32
    %c0_i32_1 = arith.constant 0 : i32
    return %c0_i32, %c0_i32_0 : i32, i32
  }
  func.func @transform_2(%arg0: i32) -> (i32, i32) {
    %c0_i32 = arith.constant 0 : i32
    %c0_i32_0 = arith.constant 0 : i32
    %c0_i32_1 = arith.constant 0 : i32
    return %c0_i32, %c0_i32_0 : i32, i32
  }
  func.func @transform_3(%arg0: i32) -> (i32, i32) {
    %c0_i32 = arith.constant 0 : i32
    %c0_i32_0 = arith.constant 0 : i32
    %c0_i32_1 = arith.constant 0 : i32
    return %c0_i32, %c0_i32_0 : i32, i32
  }
  func.func @transform_4(%arg0: i32) -> (i32, i32) {
    %c0_i32 = arith.constant 0 : i32
    %c0_i32_0 = arith.constant 0 : i32
    %c0_i32_1 = arith.constant 0 : i32
    return %c0_i32, %c0_i32_0 : i32, i32
  }
  func.func @transform_5(%arg0: i32) -> (i32, i32) {
    %c0_i32 = arith.constant 0 : i32
    %c0_i32_0 = arith.constant 0 : i32
    return %arg0, %c0_i32 : i32, i32
  }
}

</mosaic_0001>

<llo_original>
// kernel: net_forward.1
$region0: #{net_forward.1}
  #allocation0 [shape = 'u32[]', space=smem, size = 0x4, offset = 0x4, fixed_abs, tag = 'smem constant byte address 0x4 - core index']
  #allocation1 [shape = 'u32[72,128]{1,0:T(1,128)}', space=vmem, size = 0x9000, scoped, tag = 'internal scratch']
  %s0 = inlined_call_operand.vmem [shape: f32[16,4], index: 0, kind: input, shape index: {}]
  %s1 = inlined_call_operand.vmem [shape: f32[4,128], index: 1, kind: input, shape index: {}]
  %s2 = inlined_call_operand.vmem [shape: f32[1,128], index: 2, kind: input, shape index: {}]
  %s3 = inlined_call_operand.hbm [shape: bf16[128,128], index: 3, kind: input, shape index: {}]
  %s4 = inlined_call_operand.vmem [shape: f32[1,128], index: 4, kind: input, shape index: {}]
  %s5 = inlined_call_operand.vmem [shape: f32[16,128], index: 5, kind: output, shape index: {}]
  %s6 = sld [smem:[#allocation0]]
  $region57: #{net_forward.1} parent=0
    _
  %s8 = ssub.s32 1, %s6
  %s9 = scalar_select 0, %s8, %s6
  $region1: #{net_forward.1} parent=0
    #allocation2 [shape = 'u8[32768]{0}', space=vmem, size = 0x8000, scoped, tag = 'input window, operand 3, single buffered']
    #allocation3 [shape = 's32[2]{0}', space=sflag, size = 0x8, scoped, tag = 'scoped memory for net_forward.1']
    %10 = vsyncpa [#allocation3], 0
    loop: start=0, step=1, limit=4
    $region2: #{net_forward.1} parent=1 // loop_pre_header
      _
    $region3: #{net_forward.1} parent=1 // loop_header
      %s12 = sphi 0, %s16
      %p13 = scmp.ge.s32.totalorder %s12, 4
      %s22 = sphi 0, %s24
      %s25 = sphi 0, %s22
      %s26 = sphi 0, %s25
      %s42 = sphi 0, %s26
      %s46 = sphi 0, %s46
      %s48 = sphi 0, %s46
      %s49 = sphi 0, %s48
      %s63 = sphi 0, %s49
      %s67 = sphi 0, %s67
      %s69 = sphi 0, %s67
      %s70 = sphi 0, %s69
      %s84 = sphi 0, %s70
      %s88 = sphi 0, %s88
      %s90 = sphi 0, %s88
      %s91 = sphi 0, %s90
      %s105 = sphi 0, %s91
      %s109 = sphi 0, %s109
      %s111 = sphi 0, %s109
      %s112 = sphi 0, %s111
      %s126 = sphi 0, %s112
      %s132 = sphi 0, %s134
      %s135 = sphi 0, %s132
      %s136 = sphi 0, %s135
      %s152 = sphi 0, %s136
    $region4: #{net_forward.1} parent=1 // loop_header_branch
      %15 = sbr.rel (%p13) target = $region8
    $region5: #{net_forward.1} parent=1 // loop_body
      %s17 = ssub.s32 %s12, 1
      %s18 = ssub.s32 %s12, 2
      %s19 = sadd.s32 %s12, 1
      %s20 = ssub.s32 %s12, %s19
      %p21 = scmp.eq.s32.totalorder %s20, 0
      %s23 = sadd.s32 %s22, 1
      %s24 = scalar_select %p21, %s22, %s23
      %p27 = pneg %p21
      %p28 = scmp.eq.s32.totalorder %s12, 1
      %p29 = por %p27, %p28
      %p30 = scmp.ne.s32.totalorder %s22, %s25
      %p31 = scmp.eq.s32.totalorder %s12, 0
      %p32 = por %p30, %p31
      %p33 = scmp.ne.s32.totalorder %s22, %s25
      %p34 = scmp.eq.s32.totalorder %s17, 1
      %p35 = por %p33, %p34
      %p36 = scmp.ne.s32.totalorder %s25, %s26
      %p37 = scmp.eq.s32.totalorder %s17, 0
      %p38 = por %p36, %p37
      %p39 = scmp.ne.s32.totalorder %s25, %s26
      %p40 = scmp.eq.s32.totalorder %s18, 1
      %p41 = por %p39, %p40
      %p43 = scmp.ne.s32.totalorder %s26, %s42
      %p44 = scmp.eq.s32.totalorder %s18, 0
      %p45 = por %p43, %p44
      %s47 = sadd.s32 %s46, 1
      %p50 = scmp.eq.s32.totalorder %s12, 1
      %p51 = scmp.ne.s32.totalorder %s46, %s48
      %p52 = scmp.eq.s32.totalorder %s12, 0
      %p53 = por %p51, %p52
      %p54 = scmp.ne.s32.totalorder %s46, %s48
      %p55 = scmp.eq.s32.totalorder %s17, 1
      %p56 = por %p54, %p55
      %p57 = scmp.ne.s32.totalorder %s48, %s49
      %p58 = scmp.eq.s32.totalorder %s17, 0
      %p59 = por %p57, %p58
      %p60 = scmp.ne.s32.totalorder %s48, %s49
      %p61 = scmp.eq.s32.totalorder %s18, 1
      %p62 = por %p60, %p61
      %p64 = scmp.ne.s32.totalorder %s49, %s63
      %p65 = scmp.eq.s32.totalorder %s18, 0
      %p66 = por %p64, %p65
      %s68 = sadd.s32 %s67, 1
      %p71 = scmp.eq.s32.totalorder %s12, 1
      %p72 = scmp.ne.s32.totalorder %s67, %s69
      %p73 = scmp.eq.s32.totalorder %s12, 0
      %p74 = por %p72, %p73
      %p75 = scmp.ne.s32.totalorder %s67, %s69
      %p76 = scmp.eq.s32.totalorder %s17, 1
      %p77 = por %p75, %p76
      %p78 = scmp.ne.s32.totalorder %s69, %s70
      %p79 = scmp.eq.s32.totalorder %s17, 0
      %p80 = por %p78, %p79
      %p81 = scmp.ne.s32.totalorder %s69, %s70
      %p82 = scmp.eq.s32.totalorder %s18, 1
      %p83 = por %p81, %p82
      %p85 = scmp.ne.s32.totalorder %s70, %s84
      %p86 = scmp.eq.s32.totalorder %s18, 0
      %p87 = por %p85, %p86
      %s89 = sadd.s32 %s88, 1
      %p92 = scmp.eq.s32.totalorder %s12, 1
      %p93 = scmp.ne.s32.totalorder %s88, %s90
      %p94 = scmp.eq.s32.totalorder %s12, 0
      %p95 = por %p93, %p94
      %p96 = scmp.ne.s32.totalorder %s88, %s90
      %p97 = scmp.eq.s32.totalorder %s17, 1
      %p98 = por %p96, %p97
      %p99 = scmp.ne.s32.totalorder %s90, %s91
      %p100 = scmp.eq.s32.totalorder %s17, 0
      %p101 = por %p99, %p100
      %p102 = scmp.ne.s32.totalorder %s90, %s91
      %p103 = scmp.eq.s32.totalorder %s18, 1
      %p104 = por %p102, %p103
      %p106 = scmp.ne.s32.totalorder %s91, %s105
      %p107 = scmp.eq.s32.totalorder %s18, 0
      %p108 = por %p106, %p107
      %s110 = sadd.s32 %s109, 1
      %p113 = scmp.eq.s32.totalorder %s12, 1
      %p114 = scmp.ne.s32.totalorder %s109, %s111
      %p115 = scmp.eq.s32.totalorder %s12, 0
      %p116 = por %p114, %p115
      %p117 = scmp.ne.s32.totalorder %s109, %s111
      %p118 = scmp.eq.s32.totalorder %s17, 1
      %p119 = por %p117, %p118
      %p120 = scmp.ne.s32.totalorder %s111, %s112
      %p121 = scmp.eq.s32.totalorder %s17, 0
      %p122 = por %p120, %p121
      %p123 = scmp.ne.s32.totalorder %s111, %s112
      %p124 = scmp.eq.s32.totalorder %s18, 1
      %p125 = por %p123, %p124
      %p127 = scmp.ne.s32.totalorder %s112, %s126
      %p128 = scmp.eq.s32.totalorder %s18, 0
      %p129 = por %p127, %p128
      %s130 = ssub.s32 %s12, %s19
      %p131 = scmp.eq.s32.totalorder %s130, 0
      %s133 = sadd.s32 %s132, 1
      %s134 = scalar_select %p131, %s132, %s133
      %p137 = pneg %p131
      %p138 = scmp.eq.s32.totalorder %s12, 1
      %p139 = por %p137, %p138
      %p140 = scmp.ne.s32.totalorder %s132, %s135
      %p141 = scmp.eq.s32.totalorder %s12, 0
      %p142 = por %p140, %p141
      %p143 = scmp.ne.s32.totalorder %s132, %s135
      %p144 = scmp.eq.s32.totalorder %s17, 1
      %p145 = por %p143, %p144
      %p146 = scmp.ne.s32.totalorder %s135, %s136
      %p147 = scmp.eq.s32.totalorder %s17, 0
      %p148 = por %p146, %p147
      %p149 = scmp.ne.s32.totalorder %s135, %s136
      %p150 = scmp.eq.s32.totalorder %s18, 1
      %p151 = por %p149, %p150
      %p153 = scmp.ne.s32.totalorder %s136, %s152
      %p154 = scmp.eq.s32.totalorder %s18, 0
      %p155 = por %p153, %p154
      %p156 = scmp.le.s32.totalorder 1, %s12
      %p157 = scmp.lt.s32.totalorder %s12, 3
      %p158 = pnand %p156, %p157
      %p159 = pneg %p158
      // Predicated region
      $region9: #{net_forward.1} parent=5 // pred_check
        _
      $region10: #{net_forward.1} parent=5 // pred_check_branch
        %161 = sbr.rel (%p158) target = $region12
      $region11: #{net_forward.1} parent=5 // pred_region
        %s162 = ssub.s32 %s12, 1
        // Predicated region
        $region13: #{net_forward.1} parent=11 // pred_check
          %p163 = pneg %p59
        $region14: #{net_forward.1} parent=11 // pred_check_branch
          %165 = sbr.rel (%p163) target = $region16
        $region15: #{net_forward.1} parent=11 // pred_region
          _
        $region16: #{net_forward.1} parent=11 // pred_fallthru
          _
        // Predicated region
        $region17: #{net_forward.1} parent=11 // pred_check
          %p166 = pneg %p80
        $region18: #{net_forward.1} parent=11 // pred_check_branch
          %168 = sbr.rel (%p166) target = $region20
        $region19: #{net_forward.1} parent=11 // pred_region
          _
        $region20: #{net_forward.1} parent=11 // pred_fallthru
          _
        // Predicated region
        $region21: #{net_forward.1} parent=11 // pred_check
          %p169 = pneg %p101
        $region22: #{net_forward.1} parent=11 // pred_check_branch
          %171 = sbr.rel (%p169) target = $region24
        $region23: #{net_forward.1} parent=11 // pred_region
          %173 = vsyncadd [#allocation3], 0
          %s174 = sshll.u32 %s3, 4
          %s175 = int_to_ptr.hbm [resolvable:$true] %s174
          %s176 = sshll.u32 [#allocation2], 4
          %s177 = int_to_ptr.vmem [resolvable:$true] %s176
          %182 = dma.hbm_to_vmem [thread:$0]  %s175, 1024, %s177, [#allocation3], 64, 64, 4
        $region24: #{net_forward.1} parent=11 // pred_fallthru
          _
        // Predicated region
        $region25: #{net_forward.1} parent=11 // pred_check
          %p183 = pneg %p122
        $region26: #{net_forward.1} parent=11 // pred_check_branch
          %185 = sbr.rel (%p183) target = $region28
        $region27: #{net_forward.1} parent=11 // pred_region
          _
        $region28: #{net_forward.1} parent=11 // pred_fallthru
          _
      $region12: #{net_forward.1} parent=5 // pred_fallthru
        _
      %p186 = scmp.lt.s32.totalorder %s12, 2
      // Predicated region
      $region29: #{net_forward.1} parent=5 // pred_check
        %p187 = pneg %p186
      $region30: #{net_forward.1} parent=5 // pred_check_branch
        %189 = sbr.rel (%p187) target = $region32
      $region31: #{net_forward.1} parent=5 // pred_region
        // Predicated region
        $region33: #{net_forward.1} parent=31 // pred_check
          %p190 = pneg %p32
        $region34: #{net_forward.1} parent=31 // pred_check_branch
          %192 = sbr.rel (%p190) target = $region36
        $region35: #{net_forward.1} parent=31 // pred_region
          %p193 = scmp.lt.s32.totalorder %s12, 1
          %s194 = scalar_select %p193, %s12, 1
          %s195 = smul.addr %s194, 8
          %s196 = scalar_lea.vmem %s0, %s195
        $region36: #{net_forward.1} parent=31 // pred_fallthru
          _
      $region32: #{net_forward.1} parent=5 // pred_fallthru
        _
      %p197 = scmp.le.s32.totalorder 1, %s12
      %p198 = scmp.lt.s32.totalorder %s12, 3
      %p199 = pnand %p197, %p198
      %p200 = pneg %p199
      // Predicated region
      $region37: #{net_forward.1} parent=5 // pred_check
        _
      $region38: #{net_forward.1} parent=5 // pred_check_branch
        %202 = sbr.rel (%p199) target = $region40
      $region39: #{net_forward.1} parent=5 // pred_region
        %s203 = ssub.s32 %s12, 1
        // Predicated region
        $region41: #{net_forward.1} parent=39 // pred_check
          %p204 = pneg %p101
        $region42: #{net_forward.1} parent=39 // pred_check_branch
          %206 = sbr.rel (%p204) target = $region44
        $region43: #{net_forward.1} parent=39 // pred_region
          %208 = dma.done [#allocation3], 1024
        $region44: #{net_forward.1} parent=39 // pred_fallthru
          _
        %p209 = scmp.lt.s32.totalorder %s17, 1
        %s210 = scalar_select %p209, %s17, 1
        %s211 = smul.addr %s210, 8
        %s212 = scalar_lea.vmem %s0, %s211
        %p213 = pneg %p38
        %p214 = pneg %p35
        %p215 = pneg %p59
        %p216 = pneg %p56
        %p217 = pneg %p80
        %p218 = pneg %p77
        %p219 = pneg %p101
        %p220 = pneg %p98
        %p221 = pneg %p122
        %p222 = pneg %p119
        %p223 = pneg %p148
        %p224 = pneg %p145
        %p225 = scmp.lt.s32.totalorder %s17, 1
        %s226 = scalar_select %p225, %s17, 1
        %s227 = smul.addr %s226, 8
        %s228 = scalar_lea.vmem %s5, %s227
        %p229 = scmp.lt.s32.totalorder %s17, 1
        %s230 = scalar_select %p229, %s17, 1
        %s231 = smul.addr %s230, 8
        %s232 = scalar_lea.vmem %s0, %s231
        %p233 = scmp.lt.s32.totalorder %s17, 1
        %s234 = scalar_select %p233, %s17, 1
        %s235 = smul.addr %s234, 8
        %s236 = scalar_lea.vmem %s5, %s235
        %v237 = vld [vmem:[%s232] sm:$0xff]
        %v238 = vld [vmem:[%s1] sm:$0x1]
        %240 = vset.pattern.permute.xlu0 0
        %241 = vperm.xlu0 %240, %v237
        %v242 = vpop.permute.xlu0 %241
        %v244 = vperm.slane %v238, 0
        %v245 = vmul.f32 %v242, %v244
        %v246 = vld [vmem:[%s1 + $0x1] sm:$0x1]
        %247 = vset.pattern.permute.xlu0 1
        %248 = vperm.xlu0 %247, %v237
        %v249 = vpop.permute.xlu0 %248
        %v251 = vperm.slane %v246, 0
        %v252 = vmul.f32 %v249, %v251
        %v253 = vld [vmem:[%s1 + $0x2] sm:$0x1]
        %254 = vset.pattern.permute.xlu0 2
        %255 = vperm.xlu0 %254, %v237
        %v256 = vpop.permute.xlu0 %255
        %v258 = vperm.slane %v253, 0
        %v259 = vmul.f32 %v256, %v258
        %v260 = vld [vmem:[%s1 + $0x3] sm:$0x1]
        %261 = vset.pattern.permute.xlu0 3
        %262 = vperm.xlu0 %261, %v237
        %v263 = vpop.permute.xlu0 %262
        %v265 = vperm.slane %v260, 0
        %v266 = vmul.f32 %v263, %v265
        %v267 = vadd.f32 %v245, %v252
        %v268 = vadd.f32 %v259, %v266
        %v269 = vadd.f32 %v267, %v268
        %v270 = vld [vmem:[%s2] sm:$0x1]
        %v272 = vperm.slane %v270, 0
        %v274 = vadd.f32 %v269, %v272
        %v275 = vmax.f32 %v274, 0.0
        %v276 = vpack.c.bf16 %v275, %v275
        %v277 = vld [vmem:[#allocation2] sm:$0xf]
        %v278 = vld [vmem:[#allocation2 + $0x4] sm:$0xf]
        %v279 = vld [vmem:[#allocation2 + $0x8] sm:$0xf]
        %v280 = vld [vmem:[#allocation2 + $0xc] sm:$0xf]
        %v281 = vld [vmem:[#allocation2 + $0x10] sm:$0xf]
        %v282 = vld [vmem:[#allocation2 + $0x14] sm:$0xf]
        %v283 = vld [vmem:[#allocation2 + $0x18] sm:$0xf]
        %v284 = vld [vmem:[#allocation2 + $0x1c] sm:$0xf]
        %v285 = vld [vmem:[#allocation2 + $0x20] sm:$0xf]
        %v286 = vld [vmem:[#allocation2 + $0x24] sm:$0xf]
        %v287 = vld [vmem:[#allocation2 + $0x28] sm:$0xf]
        %v288 = vld [vmem:[#allocation2 + $0x2c] sm:$0xf]
        %v289 = vld [vmem:[#allocation2 + $0x30] sm:$0xf]
        %v290 = vld [vmem:[#allocation2 + $0x34] sm:$0xf]
        %v291 = vld [vmem:[#allocation2 + $0x38] sm:$0xf]
        %v292 = vld [vmem:[#allocation2 + $0x3c] sm:$0xf]
        %v293 = vld [vmem:[%s4] sm:$0x1]
        %v295 = vperm.slane %v293, 0
        %v313 = vunpack.c.l.b16 %v277
        %v314 = vunpack.c.l.b16 %v278
        %v315 = vunpack.c.l.b16 %v279
        %v316 = vunpack.c.l.b16 %v280
        %v317 = vunpack.c.l.b16 %v281
        %v318 = vunpack.c.l.b16 %v282
        %v319 = vunpack.c.l.b16 %v283
        %v320 = vunpack.c.l.b16 %v284
        %v321 = vunpack.c.l.b16 %v285
        %v322 = vunpack.c.l.b16 %v286
        %v323 = vunpack.c.l.b16 %v287
        %v324 = vunpack.c.l.b16 %v288
        %v325 = vunpack.c.l.b16 %v289
        %v326 = vunpack.c.l.b16 %v290
        %v327 = vunpack.c.l.b16 %v291
        %v328 = vunpack.c.l.b16 %v292
        %v329 = vpack.c.b16 %v314, %v313
        %v330 = vpack.c.b16 %v316, %v315
        %v331 = vpack.c.b16 %v318, %v317
        %v332 = vpack.c.b16 %v320, %v319
        %v333 = vpack.c.b16 %v322, %v321
        %v334 = vpack.c.b16 %v324, %v323
        %v335 = vpack.c.b16 %v326, %v325
        %v336 = vpack.c.b16 %v328, %v327
        %345 = vmatpush.bf16.msra.mxu0 %v336
        %346 = vmatpush.bf16.msra.mxu0 %v335
        %347 = vmatpush.bf16.msra.mxu0 %v334
        %348 = vmatpush.bf16.msra.mxu0 %v333
        %349 = vmatpush.bf16.msra.mxu0 %v332
        %350 = vmatpush.bf16.msra.mxu0 %v331
        %351 = vmatpush.bf16.msra.mxu0 %v330
        %352 = vmatpush.bf16.msra.mxu0 %v329
        %353 = vmatmul.bf16.gmra.mxu0 %v276
        %v354 = vpop.f32.mrf.mxu0
        %v355 = vadd.f32 %v295, %v354
        %v356 = vpop.f32.mrf.mxu0
        %357 = vdwg.mxu0
        %358 = vst [vmem:[%s236] sm:$0xff] %v355
        %p359 = scmp.lt.s32.totalorder %s17, 1
        %s360 = scalar_select %p359, %s17, 1
        %s361 = smul.addr %s360, 8
        %s362 = scalar_lea.vmem %s5, %s361
        // Predicated region
        $region45: #{net_forward.1} parent=39 // pred_check
          %p363 = pneg %p145
        $region46: #{net_forward.1} parent=39 // pred_check_branch
          %365 = sbr.rel (%p363) target = $region48
        $region47: #{net_forward.1} parent=39 // pred_region
          _
        $region48: #{net_forward.1} parent=39 // pred_fallthru
          _
      $region40: #{net_forward.1} parent=5 // pred_fallthru
        _
      %p366 = scmp.le.s32.totalorder 2, %s12
      // Predicated region
      $region49: #{net_forward.1} parent=5 // pred_check
        %p367 = pneg %p366
      $region50: #{net_forward.1} parent=5 // pred_check_branch
        %369 = sbr.rel (%p367) target = $region52
      $region51: #{net_forward.1} parent=5 // pred_region
        %s370 = ssub.s32 %s12, 2
        // Predicated region
        $region53: #{net_forward.1} parent=51 // pred_check
          %p371 = pneg %p151
        $region54: #{net_forward.1} parent=51 // pred_check_branch
          %373 = sbr.rel (%p371) target = $region56
        $region55: #{net_forward.1} parent=51 // pred_region
          %p374 = scmp.lt.s32.totalorder %s18, 1
          %s375 = scalar_select %p374, %s18, 1
          %s376 = smul.addr %s375, 8
          %s377 = scalar_lea.vmem %s5, %s376
        $region56: #{net_forward.1} parent=51 // pred_fallthru
          _
      $region52: #{net_forward.1} parent=5 // pred_fallthru
        _
    $region6: #{net_forward.1} parent=1 // loop_footer
      %s16 = sadd.s32 1, %s12
    $region7: #{net_forward.1} parent=1 // loop_footer_branch
      %11 = sbr.rel target = $region3
    $region8: #{net_forward.1} parent=1 // loop_exit
      _
    %378 = vsyncpa [#allocation3], 1
    %s379 = scalar_lea.sflag [#allocation3], 1
    %380 = vsyncpa %s379, 1

</llo_original>
